<compile_context>
chip_gen: v7x
topology: tpu7x:2x2x1
jax: 0.10.0
libtpu: 0.0.40
codegen_flags: <defaults>
</compile_context>

<pallas_src>
import jax
import jax.numpy as jnp
from jax.experimental import pallas as pl
from jax.experimental.pallas import tpu as pltpu


def _round_up(x: int, m: int) -> int:
    return ((x + m - 1) // m) * m


def mlp_kernel(x_ref, w1_ref, b1_ref, w2_ref, b2_ref, o_ref):
    # Hidden layer: (TB, 20) bf16 @ (20, 256) bf16 -> f32 accumulator on the MXU.
    h = jnp.dot(x_ref[...], w1_ref[...], preferred_element_type=jnp.float32)
    # Bias + ReLU in f32 on the accumulator (v5e VPU has no bf16 ALUs; this is
    # free relative to the HBM-bound DMA and keeps numerics identical everywhere).
    h = jnp.maximum(h + b1_ref[...], 0.0)
    # Cast to bf16 only at the MXU boundary for the second matmul.
    h = h.astype(w2_ref.dtype)
    # Output layer: (TB, 256) bf16 @ (256, 10) bf16 -> f32, + bias.
    y = jnp.dot(h, w2_ref[...], preferred_element_type=jnp.float32)
    y = y + b2_ref[...]
    o_ref[...] = y.astype(o_ref.dtype)


def mlp_forward(x, w1, b1, w2, b2, *, block_b=1024, compute_dtype=jnp.bfloat16):
    """Fused MLP forward.

    x:  (B, 20)    any float dtype (output matches x.dtype)
    w1: (20, 256)  b1: (1, 256)
    w2: (256, 10)  b2: (1, 10)
    """
    B, in_dim = x.shape
    hid = w1.shape[1]
    out_dim = w2.shape[1]
    out_dtype = x.dtype

    # Batch tile: big enough to amortize per-step overhead, multiple of 8
    # (sublane) so the block shape is legal when it doesn't cover the full array.
    tb = min(block_b, _round_up(B, 8))
    b_pad = _round_up(B, tb)
    grid = (b_pad // tb,)

    # bf16 for the streamed / matmul operands; biases stay f32 (added to the
    # f32 accumulator inside the kernel).
    xc = x.astype(compute_dtype)
    if b_pad != B:
        xc = jnp.pad(xc, ((0, b_pad - B), (0, 0)))
    w1c = w1.astype(compute_dtype)
    w2c = w2.astype(compute_dtype)
    b1f = b1.astype(jnp.float32)
    b2f = b2.astype(jnp.float32)

    flops = 2 * b_pad * (in_dim * hid + hid * out_dim)
    bytes_accessed = (
        xc.size * xc.dtype.itemsize
        + w1c.size * w1c.dtype.itemsize
        + w2c.size * w2c.dtype.itemsize
        + b1f.size * 4
        + b2f.size * 4
        + b_pad * out_dim * jnp.dtype(out_dtype).itemsize
    )

    y_pad = pl.pallas_call(
        mlp_kernel,
        out_shape=jax.ShapeDtypeStruct((b_pad, out_dim), out_dtype),
        grid_spec=pltpu.PrefetchScalarGridSpec(
            num_scalar_prefetch=0,
            grid=grid,
            in_specs=[
                # X tile streams over the batch grid (auto double-buffered).
                pl.BlockSpec((tb, in_dim), lambda i: (i, 0)),
                # Weights / biases: constant index_map -> resident in VMEM.
                pl.BlockSpec((in_dim, hid), lambda i: (0, 0)),
                pl.BlockSpec((1, hid), lambda i: (0, 0)),
                pl.BlockSpec((hid, out_dim), lambda i: (0, 0)),
                pl.BlockSpec((1, out_dim), lambda i: (0, 0)),
            ],
            out_specs=pl.BlockSpec((tb, out_dim), lambda i: (i, 0)),
        ),
        compiler_params=pltpu.CompilerParams(
            # Batch axis is embarrassingly parallel -> megacore sharding on v7x.
            dimension_semantics=("parallel",),
            # Explicit cap; per-step footprint is a few hundred KiB, safe on
            # every generation (v7x scoped default is 32 MiB).
            vmem_limit_bytes=32 * 1024 * 1024,
        ),
        cost_estimate=pl.CostEstimate(
            flops=flops, transcendentals=0, bytes_accessed=bytes_accessed
        ),
    )(xc, w1c, b1f, w2c, b2f)

    return y_pad[:B] if b_pad != B else y_pad


def make_params(key, in_dim=20, hidden_dim=256, out_dim=10, dtype=jnp.float32):
    """Deterministic synthetic parameters matching nn.Linear(20,256), nn.Linear(256,10)."""
    k1, k2, k3, k4 = jax.random.split(key, 4)
    s1 = 1.0 / jnp.sqrt(in_dim)
    s2 = 1.0 / jnp.sqrt(hidden_dim)
    w1 = jax.random.uniform(k1, (in_dim, hidden_dim), dtype, minval=-s1, maxval=s1)
    b1 = jax.random.uniform(k2, (1, hidden_dim), dtype, minval=-s1, maxval=s1)
    w2 = jax.random.uniform(k3, (hidden_dim, out_dim), dtype, minval=-s2, maxval=s2)
    b2 = jax.random.uniform(k4, (1, out_dim), dtype, minval=-s2, maxval=s2)
    return w1, b1, w2, b2


if __name__ == "__main__":
    key = jax.random.PRNGKey(0)
    kx, kp = jax.random.split(key)

    # Small validation shapes (perf should be measured at B >= 16K; here we only
    # exercise correctness and the multi-step grid path: B=200, TB=64 -> grid=(4,)).
    B, IN, HID, OUT = 200, 20, 256, 10
    x = jax.random.normal(kx, (B, IN), jnp.float32)
    w1, b1, w2, b2 = make_params(kp, IN, HID, OUT)

    y = mlp_forward(x, w1, b1, w2, b2, block_b=64)
    y = jax.block_until_ready(y)
    assert y.shape == (B, OUT)

    # Reference 1: same bf16-input math in plain JAX (tight tolerance).
    xb, w1b, w2b = x.astype(jnp.bfloat16), w1.astype(jnp.bfloat16), w2.astype(jnp.bfloat16)
    h_ref = jnp.maximum(
        jnp.dot(xb, w1b, preferred_element_type=jnp.float32) + b1, 0.0
    ).astype(jnp.bfloat16)
    y_ref_bf16 = jnp.dot(h_ref, w2b, preferred_element_type=jnp.float32) + b2
    assert jnp.allclose(y, y_ref_bf16, atol=1e-2, rtol=1e-2)

    # Reference 2: full-f32 math (loose tolerance, accounts for bf16 inputs).
    y_ref_f32 = jnp.maximum(x @ w1 + b1, 0.0) @ w2 + b2
    assert jnp.allclose(y, y_ref_f32, atol=5e-2, rtol=5e-2)

    print("KERNEL_OK")
</pallas_src>

<mosaic_0001>
module attributes {stable_mosaic.version = 11 : i64} {
  func.func @mlp_kernel(%arg0: i32, %arg1: memref<64x20xbf16, #tpu.memory_space<vmem>>, %arg2: memref<20x256xbf16, #tpu.memory_space<vmem>>, %arg3: memref<1x256xf32, #tpu.memory_space<vmem>>, %arg4: memref<256x10xbf16, #tpu.memory_space<vmem>>, %arg5: memref<1x10xf32, #tpu.memory_space<vmem>>, %arg6: memref<64x10xf32, #tpu.memory_space<vmem>>) attributes {dimension_semantics = [#tpu.dimension_semantics<parallel>], iteration_bounds = array<i64: 4>, scalar_prefetch = 0 : i64, scratch_operands = 0 : i64, tpu.core_type = #tpu.core_type<tc>, window_params = [{transform_indices = @transform_0, window_bounds = array<i64: 64, 20>}, {pipeline_mode = #tpu.pipeline_mode<synchronous>, transform_indices = @transform_1, window_bounds = array<i64: 20, 256>}, {pipeline_mode = #tpu.pipeline_mode<synchronous>, transform_indices = @transform_2, window_bounds = array<i64: 1, 256>}, {pipeline_mode = #tpu.pipeline_mode<synchronous>, transform_indices = @transform_3, window_bounds = array<i64: 256, 10>}, {pipeline_mode = #tpu.pipeline_mode<synchronous>, transform_indices = @transform_4, window_bounds = array<i64: 1, 10>}, {transform_indices = @transform_5, window_bounds = array<i64: 64, 10>}]} {
    %c0 = arith.constant 0 : index
    %c0_0 = arith.constant 0 : index
    %0 = vector.load %arg1[%c0, %c0_0] : memref<64x20xbf16, #tpu.memory_space<vmem>>, vector<64x20xbf16>
    %c0_1 = arith.constant 0 : index
    %c0_2 = arith.constant 0 : index
    %1 = vector.load %arg2[%c0_1, %c0_2] : memref<20x256xbf16, #tpu.memory_space<vmem>>, vector<20x256xbf16>
    %cst = arith.constant dense<0.000000e+00> : vector<64x256xf32>
    %2 = tpu.matmul %0, %1, %cst {dimension_numbers = #tpu.dot_dimension_numbers<[1], [0], [0], [1], [0, 0, 1, 1], [], []>} : vector<64x20xbf16>, vector<20x256xbf16>, vector<64x256xf32> -> vector<64x256xf32>
    %c0_3 = arith.constant 0 : index
    %c0_4 = arith.constant 0 : index
    %3 = vector.load %arg3[%c0_3, %c0_4] : memref<1x256xf32, #tpu.memory_space<vmem>>, vector<1x256xf32>
    %4 = vector.broadcast %3 : vector<1x256xf32> to vector<64x256xf32>
    %5 = arith.addf %2, %4 : vector<64x256xf32>
    %cst_5 = arith.constant 0.000000e+00 : f32
    %6 = vector.broadcast %cst_5 : f32 to vector<64x256xf32>
    %7 = arith.maximumf %5, %6 : vector<64x256xf32>
    %8 = arith.truncf %7 : vector<64x256xf32> to vector<64x256xbf16>
    %c0_6 = arith.constant 0 : index
    %c0_7 = arith.constant 0 : index
    %9 = vector.load %arg4[%c0_6, %c0_7] : memref<256x10xbf16, #tpu.memory_space<vmem>>, vector<256x10xbf16>
    %cst_8 = arith.constant dense<0.000000e+00> : vector<64x10xf32>
    %10 = tpu.matmul %8, %9, %cst_8 {dimension_numbers = #tpu.dot_dimension_numbers<[1], [0], [0], [1], [0, 0, 1, 1], [], []>} : vector<64x256xbf16>, vector<256x10xbf16>, vector<64x10xf32> -> vector<64x10xf32>
    %c0_9 = arith.constant 0 : index
    %c0_10 = arith.constant 0 : index
    %11 = vector.load %arg5[%c0_9, %c0_10] : memref<1x10xf32, #tpu.memory_space<vmem>>, vector<1x10xf32>
    %12 = vector.broadcast %11 : vector<1x10xf32> to vector<64x10xf32>
    %13 = arith.addf %10, %12 : vector<64x10xf32>
    %c0_11 = arith.constant 0 : index
    %c0_12 = arith.constant 0 : index
    %14 = vector.load %arg6[%c0_11, %c0_12] : memref<64x10xf32, #tpu.memory_space<vmem>>, vector<64x10xf32>
    tpu.vector_store %arg6[%c0_11, %c0_12], %13 {strides = array<i32>} : memref<64x10xf32, #tpu.memory_space<vmem>>, vector<64x10xf32>,
    return
  }
  func.func @transform_0(%arg0: i32) -> (i32, i32) {
    %c0_i32 = arith.constant 0 : i32
    %c0_i32_0 = arith.constant 0 : i32
    return %arg0, %c0_i32 : i32, i32
  }
  func.func @transform_1(%arg0: i32) -> (i32, i32) {
    %c0_i32 = arith.constant 0 : i32
    %c0_i32_0 = arith.constant 0 : i32
    %c0_i32_1 = arith.constant 0 : i32
    return %c0_i32, %c0_i32_0 : i32, i32
  }
  func.func @transform_2(%arg0: i32) -> (i32, i32) {
    %c0_i32 = arith.constant 0 : i32
    %c0_i32_0 = arith.constant 0 : i32
    %c0_i32_1 = arith.constant 0 : i32
    return %c0_i32, %c0_i32_0 : i32, i32
  }
  func.func @transform_3(%arg0: i32) -> (i32, i32) {
    %c0_i32 = arith.constant 0 : i32
    %c0_i32_0 = arith.constant 0 : i32
    %c0_i32_1 = arith.constant 0 : i32
    return %c0_i32, %c0_i32_0 : i32, i32
  }
  func.func @transform_4(%arg0: i32) -> (i32, i32) {
    %c0_i32 = arith.constant 0 : i32
    %c0_i32_0 = arith.constant 0 : i32
    %c0_i32_1 = arith.constant 0 : i32
    return %c0_i32, %c0_i32_0 : i32, i32
  }
  func.func @transform_5(%arg0: i32) -> (i32, i32) {
    %c0_i32 = arith.constant 0 : i32
    %c0_i32_0 = arith.constant 0 : i32
    return %arg0, %c0_i32 : i32, i32
  }
}

</mosaic_0001>

<llo_original>
// kernel: tpu_custom_call.1
$region0: #{tpu_custom_call.1}
  #allocation0 [shape = 'u32[]', space=smem, size = 0x4, offset = 0x4, fixed_abs, tag = 'smem constant byte address 0x4 - core index']
  #allocation1 [shape = 'u32[144,128]{1,0:T(1,128)}', space=vmem, size = 0x12000, scoped, tag = 'internal scratch']
  %s0 = inlined_call_operand.vmem [shape: bf16[256,20], index: 0, kind: input, shape index: {}]
  %s1 = inlined_call_operand.vmem [shape: bf16[20,256], index: 1, kind: input, shape index: {}]
  %s2 = inlined_call_operand.vmem [shape: f32[1,256], index: 2, kind: input, shape index: {}]
  %s3 = inlined_call_operand.vmem [shape: bf16[256,10], index: 3, kind: input, shape index: {}]
  %s4 = inlined_call_operand.vmem [shape: f32[1,10], index: 4, kind: input, shape index: {}]
  %s5 = inlined_call_operand.vmem [shape: f32[256,10], index: 5, kind: output, shape index: {}]
  %s6 = sld [smem:[#allocation0]]
  $region53: #{tpu_custom_call.1} parent=0
    _
  %s8 = ssub.s32 1, %s6
  %s9 = scalar_select 0, %s8, %s6
  loop: start=0, step=1, limit=6
  $region2: #{tpu_custom_call.1} parent=0 // loop_pre_header
    _
  $region3: #{tpu_custom_call.1} parent=0 // loop_header
    %s11 = sphi 0, %s15
    %p12 = scmp.ge.s32.totalorder %s11, 6
    %s21 = sphi 0, %s23
    %s24 = sphi 0, %s21
    %s25 = sphi 0, %s24
    %s41 = sphi 0, %s25
    %s45 = sphi 0, %s45
    %s47 = sphi 0, %s45
    %s48 = sphi 0, %s47
    %s62 = sphi 0, %s48
    %s66 = sphi 0, %s66
    %s68 = sphi 0, %s66
    %s69 = sphi 0, %s68
    %s83 = sphi 0, %s69
    %s87 = sphi 0, %s87
    %s89 = sphi 0, %s87
    %s90 = sphi 0, %s89
    %s104 = sphi 0, %s90
    %s108 = sphi 0, %s108
    %s110 = sphi 0, %s108
    %s111 = sphi 0, %s110
    %s125 = sphi 0, %s111
    %s131 = sphi 0, %s133
    %s134 = sphi 0, %s131
    %s135 = sphi 0, %s134
    %s151 = sphi 0, %s135
  $region4: #{tpu_custom_call.1} parent=0 // loop_header_branch
    %14 = sbr.rel (%p12) target = $region8
  $region5: #{tpu_custom_call.1} parent=0 // loop_body
    %s16 = ssub.s32 %s11, 1
    %s17 = ssub.s32 %s11, 2
    %s18 = sadd.s32 %s11, 1
    %s19 = ssub.s32 %s11, %s18
    %p20 = scmp.eq.s32.totalorder %s19, 0
    %s22 = sadd.s32 %s21, 1
    %s23 = scalar_select %p20, %s21, %s22
    %p26 = pneg %p20
    %p27 = scmp.eq.s32.totalorder %s11, 3
    %p28 = por %p26, %p27
    %p29 = scmp.ne.s32.totalorder %s21, %s24
    %p30 = scmp.eq.s32.totalorder %s11, 0
    %p31 = por %p29, %p30
    %p32 = scmp.ne.s32.totalorder %s21, %s24
    %p33 = scmp.eq.s32.totalorder %s16, 3
    %p34 = por %p32, %p33
    %p35 = scmp.ne.s32.totalorder %s24, %s25
    %p36 = scmp.eq.s32.totalorder %s16, 0
    %p37 = por %p35, %p36
    %p38 = scmp.ne.s32.totalorder %s24, %s25
    %p39 = scmp.eq.s32.totalorder %s17, 3
    %p40 = por %p38, %p39
    %p42 = scmp.ne.s32.totalorder %s25, %s41
    %p43 = scmp.eq.s32.totalorder %s17, 0
    %p44 = por %p42, %p43
    %s46 = sadd.s32 %s45, 1
    %p49 = scmp.eq.s32.totalorder %s11, 3
    %p50 = scmp.ne.s32.totalorder %s45, %s47
    %p51 = scmp.eq.s32.totalorder %s11, 0
    %p52 = por %p50, %p51
    %p53 = scmp.ne.s32.totalorder %s45, %s47
    %p54 = scmp.eq.s32.totalorder %s16, 3
    %p55 = por %p53, %p54
    %p56 = scmp.ne.s32.totalorder %s47, %s48
    %p57 = scmp.eq.s32.totalorder %s16, 0
    %p58 = por %p56, %p57
    %p59 = scmp.ne.s32.totalorder %s47, %s48
    %p60 = scmp.eq.s32.totalorder %s17, 3
    %p61 = por %p59, %p60
    %p63 = scmp.ne.s32.totalorder %s48, %s62
    %p64 = scmp.eq.s32.totalorder %s17, 0
    %p65 = por %p63, %p64
    %s67 = sadd.s32 %s66, 1
    %p70 = scmp.eq.s32.totalorder %s11, 3
    %p71 = scmp.ne.s32.totalorder %s66, %s68
    %p72 = scmp.eq.s32.totalorder %s11, 0
    %p73 = por %p71, %p72
    %p74 = scmp.ne.s32.totalorder %s66, %s68
    %p75 = scmp.eq.s32.totalorder %s16, 3
    %p76 = por %p74, %p75
    %p77 = scmp.ne.s32.totalorder %s68, %s69
    %p78 = scmp.eq.s32.totalorder %s16, 0
    %p79 = por %p77, %p78
    %p80 = scmp.ne.s32.totalorder %s68, %s69
    %p81 = scmp.eq.s32.totalorder %s17, 3
    %p82 = por %p80, %p81
    %p84 = scmp.ne.s32.totalorder %s69, %s83
    %p85 = scmp.eq.s32.totalorder %s17, 0
    %p86 = por %p84, %p85
    %s88 = sadd.s32 %s87, 1
    %p91 = scmp.eq.s32.totalorder %s11, 3
    %p92 = scmp.ne.s32.totalorder %s87, %s89
    %p93 = scmp.eq.s32.totalorder %s11, 0
    %p94 = por %p92, %p93
    %p95 = scmp.ne.s32.totalorder %s87, %s89
    %p96 = scmp.eq.s32.totalorder %s16, 3
    %p97 = por %p95, %p96
    %p98 = scmp.ne.s32.totalorder %s89, %s90
    %p99 = scmp.eq.s32.totalorder %s16, 0
    %p100 = por %p98, %p99
    %p101 = scmp.ne.s32.totalorder %s89, %s90
    %p102 = scmp.eq.s32.totalorder %s17, 3
    %p103 = por %p101, %p102
    %p105 = scmp.ne.s32.totalorder %s90, %s104
    %p106 = scmp.eq.s32.totalorder %s17, 0
    %p107 = por %p105, %p106
    %s109 = sadd.s32 %s108, 1
    %p112 = scmp.eq.s32.totalorder %s11, 3
    %p113 = scmp.ne.s32.totalorder %s108, %s110
    %p114 = scmp.eq.s32.totalorder %s11, 0
    %p115 = por %p113, %p114
    %p116 = scmp.ne.s32.totalorder %s108, %s110
    %p117 = scmp.eq.s32.totalorder %s16, 3
    %p118 = por %p116, %p117
    %p119 = scmp.ne.s32.totalorder %s110, %s111
    %p120 = scmp.eq.s32.totalorder %s16, 0
    %p121 = por %p119, %p120
    %p122 = scmp.ne.s32.totalorder %s110, %s111
    %p123 = scmp.eq.s32.totalorder %s17, 3
    %p124 = por %p122, %p123
    %p126 = scmp.ne.s32.totalorder %s111, %s125
    %p127 = scmp.eq.s32.totalorder %s17, 0
    %p128 = por %p126, %p127
    %s129 = ssub.s32 %s11, %s18
    %p130 = scmp.eq.s32.totalorder %s129, 0
    %s132 = sadd.s32 %s131, 1
    %s133 = scalar_select %p130, %s131, %s132
    %p136 = pneg %p130
    %p137 = scmp.eq.s32.totalorder %s11, 3
    %p138 = por %p136, %p137
    %p139 = scmp.ne.s32.totalorder %s131, %s134
    %p140 = scmp.eq.s32.totalorder %s11, 0
    %p141 = por %p139, %p140
    %p142 = scmp.ne.s32.totalorder %s131, %s134
    %p143 = scmp.eq.s32.totalorder %s16, 3
    %p144 = por %p142, %p143
    %p145 = scmp.ne.s32.totalorder %s134, %s135
    %p146 = scmp.eq.s32.totalorder %s16, 0
    %p147 = por %p145, %p146
    %p148 = scmp.ne.s32.totalorder %s134, %s135
    %p149 = scmp.eq.s32.totalorder %s17, 3
    %p150 = por %p148, %p149
    %p152 = scmp.ne.s32.totalorder %s135, %s151
    %p153 = scmp.eq.s32.totalorder %s17, 0
    %p154 = por %p152, %p153
    %p155 = scmp.le.s32.totalorder 1, %s11
    %p156 = scmp.lt.s32.totalorder %s11, 5
    %p157 = pnand %p155, %p156
    %p158 = pneg %p157
    // Predicated region
    $region9: #{tpu_custom_call.1} parent=5 // pred_check
      _
    $region10: #{tpu_custom_call.1} parent=5 // pred_check_branch
      %160 = sbr.rel (%p157) target = $region12
    $region11: #{tpu_custom_call.1} parent=5 // pred_region
      %s161 = ssub.s32 %s11, 1
      // Predicated region
      $region13: #{tpu_custom_call.1} parent=11 // pred_check
        %p162 = pneg %p58
      $region14: #{tpu_custom_call.1} parent=11 // pred_check_branch
        %164 = sbr.rel (%p162) target = $region16
      $region15: #{tpu_custom_call.1} parent=11 // pred_region
        _
      $region16: #{tpu_custom_call.1} parent=11 // pred_fallthru
        _
      // Predicated region
      $region17: #{tpu_custom_call.1} parent=11 // pred_check
        %p165 = pneg %p79
      $region18: #{tpu_custom_call.1} parent=11 // pred_check_branch
        %167 = sbr.rel (%p165) target = $region20
      $region19: #{tpu_custom_call.1} parent=11 // pred_region
        _
      $region20: #{tpu_custom_call.1} parent=11 // pred_fallthru
        _
      // Predicated region
      $region21: #{tpu_custom_call.1} parent=11 // pred_check
        %p168 = pneg %p100
      $region22: #{tpu_custom_call.1} parent=11 // pred_check_branch
        %170 = sbr.rel (%p168) target = $region24
      $region23: #{tpu_custom_call.1} parent=11 // pred_region
        _
      $region24: #{tpu_custom_call.1} parent=11 // pred_fallthru
        _
      // Predicated region
      $region25: #{tpu_custom_call.1} parent=11 // pred_check
        %p171 = pneg %p121
      $region26: #{tpu_custom_call.1} parent=11 // pred_check_branch
        %173 = sbr.rel (%p171) target = $region28
      $region27: #{tpu_custom_call.1} parent=11 // pred_region
        _
      $region28: #{tpu_custom_call.1} parent=11 // pred_fallthru
        _
    $region12: #{tpu_custom_call.1} parent=5 // pred_fallthru
      _
    %p174 = scmp.lt.s32.totalorder %s11, 4
    // Predicated region
    $region29: #{tpu_custom_call.1} parent=5 // pred_check
      %p175 = pneg %p174
    $region30: #{tpu_custom_call.1} parent=5 // pred_check_branch
      %177 = sbr.rel (%p175) target = $region32
    $region31: #{tpu_custom_call.1} parent=5 // pred_region
      // Predicated region
      $region33: #{tpu_custom_call.1} parent=31 // pred_check
        %p178 = pneg %p31
      $region34: #{tpu_custom_call.1} parent=31 // pred_check_branch
        %180 = sbr.rel (%p178) target = $region36
      $region35: #{tpu_custom_call.1} parent=31 // pred_region
        %s181 = smul.u32 8, %s11
        %p182 = scmp.lt.s32.totalorder %s181, 31
        %s183 = scalar_select %p182, %s181, 31
        %s184 = smul.addr %s183, 4
        %s185 = scalar_lea.vmem %s0, %s184
        %s186 = smul.u32 8, %s11
      $region36: #{tpu_custom_call.1} parent=31 // pred_fallthru
        _
    $region32: #{tpu_custom_call.1} parent=5 // pred_fallthru
      _
    %p187 = scmp.le.s32.totalorder 1, %s11
    %p188 = scmp.lt.s32.totalorder %s11, 5
    %p189 = pnand %p187, %p188
    %p190 = pneg %p189
    // Predicated region
    $region37: #{tpu_custom_call.1} parent=5 // pred_check
      _
    $region38: #{tpu_custom_call.1} parent=5 // pred_check_branch
      %192 = sbr.rel (%p189) target = $region40
    $region39: #{tpu_custom_call.1} parent=5 // pred_region
      %s193 = ssub.s32 %s11, 1
      %s194 = smul.u32 8, %s16
      %p195 = scmp.lt.s32.totalorder %s194, 31
      %s196 = scalar_select %p195, %s194, 31
      %s197 = smul.addr %s196, 4
      %s198 = scalar_lea.vmem %s0, %s197
      %p199 = pneg %p37
      %p200 = pneg %p34
      %p201 = pneg %p58
      %p202 = pneg %p55
      %p203 = pneg %p79
      %p204 = pneg %p76
      %p205 = pneg %p100
      %p206 = pneg %p97
      %p207 = pneg %p121
      %p208 = pneg %p118
      %p209 = pneg %p147
      %p210 = pneg %p144
      %s211 = smul.u32 8, %s16
      %p212 = scmp.lt.s32.totalorder %s211, 31
      %s213 = scalar_select %p212, %s211, 31
      %s214 = smul.addr %s213, 8
      %s215 = scalar_lea.vmem %s5, %s214
      %s216 = smul.u32 8, %s16
      %p217 = scmp.lt.s32.totalorder %s216, 31
      %s218 = scalar_select %p217, %s216, 31
      %s219 = smul.addr %s218, 4
      %s220 = scalar_lea.vmem %s0, %s219
      %s221 = smul.u32 8, %s16
      %s222 = smul.u32 8, %s16
      %p223 = scmp.lt.s32.totalorder %s222, 31
      %s224 = scalar_select %p223, %s222, 31
      %s225 = smul.addr %s224, 8
      %s226 = scalar_lea.vmem %s5, %s225
      %s227 = smul.u32 8, %s16
      %v229 = vld [vmem:[%s220] sm:$0xf]
      %v230 = vld [vmem:[%s220 + $0x4] sm:$0xf]
      %v231 = vld [vmem:[%s220 + $0x8] sm:$0xf]
      %v232 = vld [vmem:[%s220 + $0xc] sm:$0xf]
      %v233 = vld [vmem:[%s220 + $0x10] sm:$0xf]
      %v234 = vld [vmem:[%s220 + $0x14] sm:$0xf]
      %v235 = vld [vmem:[%s220 + $0x18] sm:$0xf]
      %v236 = vld [vmem:[%s220 + $0x1c] sm:$0xf]
      %v237 = vld [vmem:[%s1] sm:$0xff]
      %v238 = vld [vmem:[%s1 + $0x8] sm:$0xff]
      %v239 = vld [vmem:[%s1 + $0x10] sm:$0x33]
      %v240 = vld [vmem:[%s2] sm:$0x3]
      %v242 = vlaneseq
      %v243 = vshrl.u32 %v242, 7
      %v244 = vsub.s32 0, %v243
      %v245 = vrot.slane %v240, %v244
      %v246 = vlaneseq
      %v247 = vshrl.u32 %v246, 7
      %v248 = vsub.s32 1, %v247
      %v249 = vrot.slane %v240, %v248
      %v260 = vunpack.c.l.b16 %v229
      %v261 = vunpack.c.l.b16 %v230
      %v262 = vunpack.c.l.b16 %v231
      %v263 = vunpack.c.l.b16 %v232
      %v264 = vunpack.c.l.b16 %v233
      %v265 = vunpack.c.l.b16 %v234
      %v266 = vunpack.c.l.b16 %v235
      %v267 = vunpack.c.l.b16 %v236
      %v268 = vpack.c.b16 %v261, %v260
      %v269 = vpack.c.b16 %v263, %v262
      %v270 = vpack.c.b16 %v265, %v264
      %v271 = vpack.c.b16 %v267, %v266
      %v275 = vunpack.c.l.b16 %v237
      %v276 = vunpack.c.h.b16 %v237
      %v277 = vunpack.c.l.b16 %v238
      %v278 = vunpack.c.h.b16 %v238
      %v279 = vunpack.c.l.b16 %v239
      %v280 = vunpack.c.h.b16 %v239
      %v281 = vpack.c.b16 %v277, %v275
      %v282 = vpack.c.b16 %v278, %v276
      %v283 = vpack.c.b16 %v279, %v279
      %v284 = vpack.c.b16 %v280, %v280
      %vm287 = vcmask 162816
      %v289 = vsel %vm287, %v268, 0
      %v292 = vsel %vm287, %v269, 0
      %v295 = vsel %vm287, %v270, 0
      %v298 = vsel %vm287, %v271, 0
      %vm300 = vcmask 1041408
      %v302 = vsel %vm300, %v283, 0
      %v305 = vsel %vm300, %v284, 0
      %307 = vmatprep.subr.bf16.mxu0 %v282
      %308 = vmatpush1.bf16.msra.mxu0 %v281
      %309 = vmatprep.subr.bf16.mxu0 %v305
      %310 = vmatpush1.bf16.msra.mxu0 %v302
      %311 = vmatprep.subr.bf16.mxu0 0
      %312 = vmatpush1.bf16.msra.mxu0 0
      %313 = vmatprep.subr.bf16.mxu0 0
      %314 = vmatpush1.bf16.msra.mxu0 0
      %315 = vmatprep.subr.bf16.mxu0 0
      %316 = vmatpush1.bf16.msra.mxu0 0
      %317 = vmatprep.subr.bf16.mxu0 0
      %318 = vmatpush1.bf16.msra.mxu0 0
      %319 = vmatprep.subr.bf16.mxu0 0
      %320 = vmatpush1.bf16.msra.mxu0 0
      %321 = vmatprep.subr.bf16.mxu0 0
      %322 = vmatpush1.bf16.msra.mxu0 0
      %323 = vmatprep.subr.bf16.mxu0 0
      %324 = vmatpush1.bf16.msra.mxu0 0
      %325 = vmatprep.subr.bf16.mxu0 0
      %326 = vmatpush1.bf16.msra.mxu0 0
      %327 = vmatprep.subr.bf16.mxu0 0
      %328 = vmatpush1.bf16.msra.mxu0 0
      %329 = vmatprep.subr.bf16.mxu0 0
      %330 = vmatpush1.bf16.msra.mxu0 0
      %331 = vmatprep.subr.bf16.mxu0 0
      %332 = vmatpush1.bf16.msra.mxu0 0
      %333 = vmatprep.subr.bf16.mxu0 0
      %334 = vmatpush1.bf16.msra.mxu0 0
      %335 = vmatprep.subr.bf16.mxu0 0
      %336 = vmatpush1.bf16.msra.mxu0 0
      %337 = vmatprep.subr.bf16.mxu0 0
      %338 = vmatpush1.bf16.msra.mxu0 0
      %339 = vmatprep.mubr.bf16.mxu0 0
      %340 = vmatmul.mubr.bf16.gmra.mrb[0].mxu0 %v289
      %v341 = vpop.f32.mrb[0].mxu0
      %v342 = vadd.f32 %v245, %v341
      %v343 = vpop.f32.mrb[0].mxu0
      %v344 = vadd.f32 %v249, %v343
      %v345 = vpop.f32.mrb[0].mxu0
      %v346 = vadd.f32 %v245, %v345
      %v347 = vpop.f32.mrb[0].mxu0
      %v348 = vadd.f32 %v249, %v347
      %349 = vmatprep.mubr.bf16.mxu0 0
      %350 = vmatmul.mubr.bf16.gmra.mrb[0].mxu0 %v292
      %v351 = vpop.f32.mrb[0].mxu0
      %v352 = vadd.f32 %v245, %v351
      %v353 = vpop.f32.mrb[0].mxu0
      %v354 = vadd.f32 %v249, %v353
      %v355 = vpop.f32.mrb[0].mxu0
      %v356 = vadd.f32 %v245, %v355
      %v357 = vpop.f32.mrb[0].mxu0
      %v358 = vadd.f32 %v249, %v357
      %359 = vmatprep.mubr.bf16.mxu0 0
      %360 = vmatmul.mubr.bf16.gmra.mrb[0].mxu0 %v295
      %v361 = vpop.f32.mrb[0].mxu0
      %v362 = vadd.f32 %v245, %v361
      %v363 = vpop.f32.mrb[0].mxu0
      %v364 = vadd.f32 %v249, %v363
      %v365 = vpop.f32.mrb[0].mxu0
      %v366 = vadd.f32 %v245, %v365
      %v367 = vpop.f32.mrb[0].mxu0
      %v368 = vadd.f32 %v249, %v367
      %369 = vmatprep.mubr.bf16.mxu0 0
      %370 = vmatmul.mubr.bf16.gmra.mrb[0].mxu0 %v298
      %v371 = vpop.f32.mrb[0].mxu0
      %v372 = vadd.f32 %v245, %v371
      %v373 = vpop.f32.mrb[0].mxu0
      %v374 = vadd.f32 %v249, %v373
      %v375 = vpop.f32.mrb[0].mxu0
      %v376 = vadd.f32 %v245, %v375
      %v377 = vpop.f32.mrb[0].mxu0
      %v378 = vadd.f32 %v249, %v377
      %379 = vdwg.mxu0
      %v380 = vmax.f32 %v342, 0.0
      %v381 = vmax.f32 %v344, 0.0
      %v382 = vmax.f32 %v346, 0.0
      %v383 = vmax.f32 %v348, 0.0
      %v384 = vmax.f32 %v352, 0.0
      %v385 = vmax.f32 %v354, 0.0
      %v386 = vmax.f32 %v356, 0.0
      %v387 = vmax.f32 %v358, 0.0
      %v388 = vmax.f32 %v362, 0.0
      %v389 = vmax.f32 %v364, 0.0
      %v390 = vmax.f32 %v366, 0.0
      %v391 = vmax.f32 %v368, 0.0
      %v392 = vmax.f32 %v372, 0.0
      %v393 = vmax.f32 %v374, 0.0
      %v394 = vmax.f32 %v376, 0.0
      %v395 = vmax.f32 %v378, 0.0
      %v396 = vpack.c.bf16 %v382, %v380
      %v397 = vpack.c.bf16 %v383, %v381
      %v398 = vpack.c.bf16 %v386, %v384
      %v399 = vpack.c.bf16 %v387, %v385
      %v400 = vpack.c.bf16 %v390, %v388
      %v401 = vpack.c.bf16 %v391, %v389
      %v402 = vpack.c.bf16 %v394, %v392
      %v403 = vpack.c.bf16 %v395, %v393
      %v404 = vld [vmem:[%s3] sm:$0xf]
      %v405 = vld [vmem:[%s3 + $0x4] sm:$0xf]
      %v406 = vld [vmem:[%s3 + $0x8] sm:$0xf]
      %v407 = vld [vmem:[%s3 + $0xc] sm:$0xf]
      %v408 = vld [vmem:[%s3 + $0x10] sm:$0xf]
      %v409 = vld [vmem:[%s3 + $0x14] sm:$0xf]
      %v410 = vld [vmem:[%s3 + $0x18] sm:$0xf]
      %v411 = vld [vmem:[%s3 + $0x1c] sm:$0xf]
      %v412 = vld [vmem:[%s3 + $0x20] sm:$0xf]
      %v413 = vld [vmem:[%s3 + $0x24] sm:$0xf]
      %v414 = vld [vmem:[%s3 + $0x28] sm:$0xf]
      %v415 = vld [vmem:[%s3 + $0x2c] sm:$0xf]
      %v416 = vld [vmem:[%s3 + $0x30] sm:$0xf]
      %v417 = vld [vmem:[%s3 + $0x34] sm:$0xf]
      %v418 = vld [vmem:[%s3 + $0x38] sm:$0xf]
      %v419 = vld [vmem:[%s3 + $0x3c] sm:$0xf]
      %v420 = vld [vmem:[%s3 + $0x40] sm:$0xf]
      %v421 = vld [vmem:[%s3 + $0x44] sm:$0xf]
      %v422 = vld [vmem:[%s3 + $0x48] sm:$0xf]
      %v423 = vld [vmem:[%s3 + $0x4c] sm:$0xf]
      %v424 = vld [vmem:[%s3 + $0x50] sm:$0xf]
      %v425 = vld [vmem:[%s3 + $0x54] sm:$0xf]
      %v426 = vld [vmem:[%s3 + $0x58] sm:$0xf]
      %v427 = vld [vmem:[%s3 + $0x5c] sm:$0xf]
      %v428 = vld [vmem:[%s3 + $0x60] sm:$0xf]
      %v429 = vld [vmem:[%s3 + $0x64] sm:$0xf]
      %v430 = vld [vmem:[%s3 + $0x68] sm:$0xf]
      %v431 = vld [vmem:[%s3 + $0x6c] sm:$0xf]
      %v432 = vld [vmem:[%s3 + $0x70] sm:$0xf]
      %v433 = vld [vmem:[%s3 + $0x74] sm:$0xf]
      %v434 = vld [vmem:[%s3 + $0x78] sm:$0xf]
      %v435 = vld [vmem:[%s3 + $0x7c] sm:$0xf]
      %v436 = vld [vmem:[%s4] sm:$0x1]
      %v438 = vlaneseq
      %v439 = vshrl.u32 %v438, 7
      %v440 = vsub.s32 0, %v439
      %v441 = vrot.slane %v436, %v440
      %v475 = vunpack.c.l.b16 %v404
      %v476 = vunpack.c.l.b16 %v405
      %v477 = vunpack.c.l.b16 %v406
      %v478 = vunpack.c.l.b16 %v407
      %v479 = vunpack.c.l.b16 %v408
      %v480 = vunpack.c.l.b16 %v409
      %v481 = vunpack.c.l.b16 %v410
      %v482 = vunpack.c.l.b16 %v411
      %v483 = vunpack.c.l.b16 %v412
      %v484 = vunpack.c.l.b16 %v413
      %v485 = vunpack.c.l.b16 %v414
      %v486 = vunpack.c.l.b16 %v415
      %v487 = vunpack.c.l.b16 %v416
      %v488 = vunpack.c.l.b16 %v417
      %v489 = vunpack.c.l.b16 %v418
      %v490 = vunpack.c.l.b16 %v419
      %v491 = vunpack.c.l.b16 %v420
      %v492 = vunpack.c.l.b16 %v421
      %v493 = vunpack.c.l.b16 %v422
      %v494 = vunpack.c.l.b16 %v423
      %v495 = vunpack.c.l.b16 %v424
      %v496 = vunpack.c.l.b16 %v425
      %v497 = vunpack.c.l.b16 %v426
      %v498 = vunpack.c.l.b16 %v427
      %v499 = vunpack.c.l.b16 %v428
      %v500 = vunpack.c.l.b16 %v429
      %v501 = vunpack.c.l.b16 %v430
      %v502 = vunpack.c.l.b16 %v431
      %v503 = vunpack.c.l.b16 %v432
      %v504 = vunpack.c.l.b16 %v433
      %v505 = vunpack.c.l.b16 %v434
      %v506 = vunpack.c.l.b16 %v435
      %v507 = vpack.c.b16 %v476, %v475
      %v508 = vpack.c.b16 %v478, %v477
      %v509 = vpack.c.b16 %v480, %v479
      %v510 = vpack.c.b16 %v482, %v481
      %v511 = vpack.c.b16 %v484, %v483
      %v512 = vpack.c.b16 %v486, %v485
      %v513 = vpack.c.b16 %v488, %v487
      %v514 = vpack.c.b16 %v490, %v489
      %v515 = vpack.c.b16 %v492, %v491
      %v516 = vpack.c.b16 %v494, %v493
      %v517 = vpack.c.b16 %v496, %v495
      %v518 = vpack.c.b16 %v498, %v497
      %v519 = vpack.c.b16 %v500, %v499
      %v520 = vpack.c.b16 %v502, %v501
      %v521 = vpack.c.b16 %v504, %v503
      %v522 = vpack.c.b16 %v506, %v505
      %539 = vmatprep.subr.bf16.mxu0 0
      %540 = vmatpush1.bf16.msra.mxu0 %v507
      %541 = vmatprep.subr.bf16.mxu0 0
      %542 = vmatpush1.bf16.msra.mxu0 %v508
      %543 = vmatprep.subr.bf16.mxu0 0
      %544 = vmatpush1.bf16.msra.mxu0 %v509
      %545 = vmatprep.subr.bf16.mxu0 0
      %546 = vmatpush1.bf16.msra.mxu0 %v510
      %547 = vmatprep.subr.bf16.mxu0 0
      %548 = vmatpush1.bf16.msra.mxu0 %v511
      %549 = vmatprep.subr.bf16.mxu0 0
      %550 = vmatpush1.bf16.msra.mxu0 %v512
      %551 = vmatprep.subr.bf16.mxu0 0
      %552 = vmatpush1.bf16.msra.mxu0 %v513
      %553 = vmatprep.subr.bf16.mxu0 0
      %554 = vmatpush1.bf16.msra.mxu0 %v514
      %555 = vmatprep.subr.bf16.mxu0 0
      %556 = vmatpush1.bf16.msra.mxu0 %v515
      %557 = vmatprep.subr.bf16.mxu0 0
      %558 = vmatpush1.bf16.msra.mxu0 %v516
      %559 = vmatprep.subr.bf16.mxu0 0
      %560 = vmatpush1.bf16.msra.mxu0 %v517
      %561 = vmatprep.subr.bf16.mxu0 0
      %562 = vmatpush1.bf16.msra.mxu0 %v518
      %563 = vmatprep.subr.bf16.mxu0 0
      %564 = vmatpush1.bf16.msra.mxu0 %v519
      %565 = vmatprep.subr.bf16.mxu0 0
      %566 = vmatpush1.bf16.msra.mxu0 %v520
      %567 = vmatprep.subr.bf16.mxu0 0
      %568 = vmatpush1.bf16.msra.mxu0 %v521
      %569 = vmatprep.subr.bf16.mxu0 0
      %570 = vmatpush1.bf16.msra.mxu0 %v522
      %571 = vmatprep.mubr.bf16.mxu0 %v397
      %572 = vmatmul.mubr.bf16.gmra.mrb[0].mxu0 %v396
      %v573 = vpop.f32.mrb[0].mxu0
      %v574 = vadd.f32 %v441, %v573
      %v575 = vpop.f32.mrb[0].mxu0
      %v576 = vpop.f32.mrb[0].mxu0
      %v577 = vadd.f32 %v441, %v576
      %v578 = vpop.f32.mrb[0].mxu0
      %579 = vmatprep.mubr.bf16.mxu0 %v399
      %580 = vmatmul.mubr.bf16.gmra.mrb[0].mxu0 %v398
      %v581 = vpop.f32.mrb[0].mxu0
      %v582 = vadd.f32 %v441, %v581
      %v583 = vpop.f32.mrb[0].mxu0
      %v584 = vpop.f32.mrb[0].mxu0
      %v585 = vadd.f32 %v441, %v584
      %v586 = vpop.f32.mrb[0].mxu0
      %587 = vmatprep.mubr.bf16.mxu0 %v401
      %588 = vmatmul.mubr.bf16.gmra.mrb[0].mxu0 %v400
      %v589 = vpop.f32.mrb[0].mxu0
      %v590 = vadd.f32 %v441, %v589
      %v591 = vpop.f32.mrb[0].mxu0
      %v592 = vpop.f32.mrb[0].mxu0
      %v593 = vadd.f32 %v441, %v592
      %v594 = vpop.f32.mrb[0].mxu0
      %595 = vmatprep.mubr.bf16.mxu0 %v403
      %596 = vmatmul.mubr.bf16.gmra.mrb[0].mxu0 %v402
      %v597 = vpop.f32.mrb[0].mxu0
      %v598 = vadd.f32 %v441, %v597
      %v599 = vpop.f32.mrb[0].mxu0
      %v600 = vpop.f32.mrb[0].mxu0
      %v601 = vadd.f32 %v441, %v600
      %v602 = vpop.f32.mrb[0].mxu0
      %603 = vdwg.mxu0
      %vm604 = vcmask 80896
      %605 = vst.msk [vmem:[%s226] sm:$0xff] %vm604, %v574
      %606 = vst.msk [vmem:[%s226 + $0x8] sm:$0xff] %vm604, %v577
      %607 = vst.msk [vmem:[%s226 + $0x10] sm:$0xff] %vm604, %v582
      %608 = vst.msk [vmem:[%s226 + $0x18] sm:$0xff] %vm604, %v585
      %609 = vst.msk [vmem:[%s226 + $0x20] sm:$0xff] %vm604, %v590
      %610 = vst.msk [vmem:[%s226 + $0x28] sm:$0xff] %vm604, %v593
      %611 = vst.msk [vmem:[%s226 + $0x30] sm:$0xff] %vm604, %v598
      %612 = vst.msk [vmem:[%s226 + $0x38] sm:$0xff] %vm604, %v601
      %s613 = smul.u32 8, %s16
      %p614 = scmp.lt.s32.totalorder %s613, 31
      %s615 = scalar_select %p614, %s613, 31
      %s616 = smul.addr %s615, 8
      %s617 = scalar_lea.vmem %s5, %s616
      // Predicated region
      $region41: #{tpu_custom_call.1} parent=39 // pred_check
        %p618 = pneg %p144
      $region42: #{tpu_custom_call.1} parent=39 // pred_check_branch
        %620 = sbr.rel (%p618) target = $region44
      $region43: #{tpu_custom_call.1} parent=39 // pred_region
        %s621 = smul.u32 8, %s16
      $region44: #{tpu_custom_call.1} parent=39 // pred_fallthru
        _
    $region40: #{tpu_custom_call.1} parent=5 // pred_fallthru
      _
    %p622 = scmp.le.s32.totalorder 2, %s11
    // Predicated region
    $region45: #{tpu_custom_call.1} parent=5 // pred_check
      %p623 = pneg %p622
    $region46: #{tpu_custom_call.1} parent=5 // pred_check_branch
      %625 = sbr.rel (%p623) target = $region48
    $region47: #{tpu_custom_call.1} parent=5 // pred_region
      %s626 = ssub.s32 %s11, 2
      // Predicated region
      $region49: #{tpu_custom_call.1} parent=47 // pred_check
        %p627 = pneg %p150
      $region50: #{tpu_custom_call.1} parent=47 // pred_check_branch
        %629 = sbr.rel (%p627) target = $region52
      $region51: #{tpu_custom_call.1} parent=47 // pred_region
        %s630 = smul.u32 8, %s17
        %p631 = scmp.lt.s32.totalorder %s630, 31
        %s632 = scalar_select %p631, %s630, 31
        %s633 = smul.addr %s632, 8
        %s634 = scalar_lea.vmem %s5, %s633
      $region52: #{tpu_custom_call.1} parent=47 // pred_fallthru
        _
    $region48: #{tpu_custom_call.1} parent=5 // pred_fallthru
      _
  $region6: #{tpu_custom_call.1} parent=0 // loop_footer
    %s15 = sadd.s32 1, %s11
  $region7: #{tpu_custom_call.1} parent=0 // loop_footer_branch
    %10 = sbr.rel target = $region3
  $region8: #{tpu_custom_call.1} parent=0 // loop_exit
    _

</llo_original>
